<compile_context>
chip_gen: v7x
topology: tpu7x:2x2x1
jax: 0.10.0
libtpu: 0.0.40
codegen_flags: <defaults>
</compile_context>

<pallas_src>
import functools

import jax
import jax.numpy as jnp
from jax.experimental import pallas as pl
from jax.experimental.pallas import tpu as pltpu

INPUT_DIM = 2
LATENT_DIM = 2
H1 = 32
H2 = 16

# Fused-layer table: (name, fan_in, fan_out). "heads" is the fused mu|logvar head.
_LAYERS = [
    ("enc1", INPUT_DIM, H1),
    ("enc2", H1, H2),
    ("heads", H2, 2 * LATENT_DIM),
    ("dec1", LATENT_DIM, H2),
    ("dec2", H2, H1),
    ("dec3", H1, INPUT_DIM),
]


def _round_up(n, m):
    return (n + m - 1) // m * m


def _slab_layout(group):
    """Row offsets of each block-diagonal weight block, bias-row offset, slab shape."""
    w_off = []
    off = 0
    for _name, fin, _fout in _LAYERS:
        w_off.append(off)
        off += _round_up(fin * group, 8)
    b_off = off
    rows = _round_up(b_off + len(_LAYERS), 8)
    width = _round_up(H1 * group, 128)      # widest fan_out * group, lane aligned
    return tuple(w_off), b_off, rows, width


@functools.lru_cache(maxsize=None)
def _make_kernel(group):
    G = group
    w_off, b_off, _rows, _width = _slab_layout(G)

    def kernel(x_ref, eps_ref, p_ref, out_ref):
        x = x_ref[...]                        # (tb, 2G) — G batch elements per row
        eps = eps_ref[...]                    # (tb, 2G)
        b = p_ref[b_off:b_off + 8, :]         # all six bias rows in one aligned load

        # ---- encoder layer 1: Linear(2 -> 32) x G groups (block-diagonal, MXU) ----
        h = jnp.dot(x, p_ref[w_off[0]:w_off[0] + INPUT_DIM * G, :H1 * G],
                    preferred_element_type=jnp.float32) + b[0:1, :H1 * G]
        h = jnp.maximum(h, 0.0)

        # ---- encoder layer 2: Linear(32 -> 16) x G ----
        h = jnp.dot(h, p_ref[w_off[1]:w_off[1] + H1 * G, :H2 * G],
                    preferred_element_type=jnp.float32) + b[1:2, :H2 * G]
        h = jnp.maximum(h, 0.0)

        # ---- fused mu|logvar heads: Linear(16 -> 4) x G ----
        # Packed so mu of all groups sits in lanes [0, 2G) and logvar in [2G, 4G):
        # contiguous lane slices that line up with eps's packed layout.
        ml = jnp.dot(h, p_ref[w_off[2]:w_off[2] + H2 * G, :2 * LATENT_DIM * G],
                     preferred_element_type=jnp.float32) + b[2:3, :2 * LATENT_DIM * G]
        mu = ml[:, :LATENT_DIM * G]
        logvar = ml[:, LATENT_DIM * G:2 * LATENT_DIM * G]

        # ---- reparameterize: z = mu + eps * exp(0.5 * logvar)  (exp stays on the EUP) ----
        z = mu + eps * jnp.exp(0.5 * logvar)

        # ---- decoder layer 1: Linear(2 -> 16) x G ----
        d = jnp.dot(z, p_ref[w_off[3]:w_off[3] + LATENT_DIM * G, :H2 * G],
                    preferred_element_type=jnp.float32) + b[3:4, :H2 * G]
        d = jnp.maximum(d, 0.0)

        # ---- decoder layer 2: Linear(16 -> 32) x G ----
        d = jnp.dot(d, p_ref[w_off[4]:w_off[4] + H2 * G, :H1 * G],
                    preferred_element_type=jnp.float32) + b[4:5, :H1 * G]
        d = jnp.maximum(d, 0.0)

        # ---- decoder layer 3: Linear(32 -> 2) x G ----
        out = jnp.dot(d, p_ref[w_off[5]:w_off[5] + H1 * G, :INPUT_DIM * G],
                      preferred_element_type=jnp.float32) + b[5:6, :INPUT_DIM * G]

        out_ref[...] = out.astype(out_ref.dtype)

    return kernel


def init_params(key):
    """PyTorch-style U(-1/sqrt(fan_in), +1/sqrt(fan_in)) init.

    Weights stored already transposed to (in, out); biases as (out,).
    """
    shapes = {
        "enc1": (INPUT_DIM, H1),
        "enc2": (H1, H2),
        "mu": (H2, LATENT_DIM),
        "logvar": (H2, LATENT_DIM),
        "dec1": (LATENT_DIM, H2),
        "dec2": (H2, H1),
        "dec3": (H1, INPUT_DIM),
    }
    params = {}
    for name, (fin, fout) in shapes.items():
        key, kw, kb = jax.random.split(key, 3)
        bound = 1.0 / (fin ** 0.5)
        params["w_" + name] = jax.random.uniform(
            kw, (fin, fout), jnp.float32, minval=-bound, maxval=bound)
        params["b_" + name] = jax.random.uniform(
            kb, (fout,), jnp.float32, minval=-bound, maxval=bound)
    return params


def pack_params(params, group=8):
    """Pack all weights/biases, block-diagonally replicated `group` times, into one slab."""
    G = group
    w_off, b_off, rows, width = _slab_layout(G)
    slab = jnp.zeros((rows, width), jnp.float32)
    for l, (name, fin, fout) in enumerate(_LAYERS):
        if name == "heads":
            # mu columns for all groups first, then logvar columns (matches eps lane layout).
            for g in range(G):
                r0 = w_off[l] + g * fin
                cmu = g * LATENT_DIM
                clv = LATENT_DIM * G + g * LATENT_DIM
                slab = slab.at[r0:r0 + fin, cmu:cmu + LATENT_DIM].set(params["w_mu"])
                slab = slab.at[r0:r0 + fin, clv:clv + LATENT_DIM].set(params["w_logvar"])
                slab = slab.at[b_off + l, cmu:cmu + LATENT_DIM].set(params["b_mu"])
                slab = slab.at[b_off + l, clv:clv + LATENT_DIM].set(params["b_logvar"])
        else:
            w = params["w_" + name]
            bvec = params["b_" + name]
            for g in range(G):
                r0 = w_off[l] + g * fin
                c0 = g * fout
                slab = slab.at[r0:r0 + fin, c0:c0 + fout].set(w)
                slab = slab.at[b_off + l, c0:c0 + fout].set(bvec)
    return slab


@functools.partial(jax.jit, static_argnames=("group", "batch_tile"))
def vae_forward(x, eps, param_slab, *, group=8, batch_tile=2048):
    """Full VAE forward (encode -> reparameterize -> decode) in one Pallas kernel.

    group:      G-way batch-group lane packing (8 for v6e/v7x, 4 recommended on v5e).
    batch_tile: target batch elements per grid step.
    """
    G = group
    batch, input_dim = x.shape
    assert input_dim == INPUT_DIM
    assert eps.shape == (batch, LATENT_DIM)
    _w_off, _b_off, slab_rows, slab_w = _slab_layout(G)
    assert param_slab.shape == (slab_rows, slab_w)

    # Pad batch to a multiple of G, then fold G batch elements into the lane dim
    # (free row-major reshape): (batch, 2) -> (rows, 2G).
    bp = _round_up(batch, G)
    if bp != batch:
        x = jnp.pad(x, ((0, bp - batch), (0, 0)))
        eps = jnp.pad(eps, ((0, bp - batch), (0, 0)))
    rows = bp // G
    xg = x.reshape(rows, INPUT_DIM * G)
    eg = eps.reshape(rows, LATENT_DIM * G)

    # Row tile: ~batch_tile elements per step, capped so the grid has >=2 steps when there
    # is enough work (lets "parallel" shard across both v7x TensorCores).
    rows8 = _round_up(rows, 8)
    want = _round_up(max(8, batch_tile // G), 8)
    half = _round_up(pl.cdiv(rows8, 2), 8)
    tb = max(8, min(want, half))
    padded_rows = _round_up(rows8, tb)
    if padded_rows != rows:
        xg = jnp.pad(xg, ((0, padded_rows - rows), (0, 0)))
        eg = jnp.pad(eg, ((0, padded_rows - rows), (0, 0)))

    out = pl.pallas_call(
        _make_kernel(G),
        out_shape=jax.ShapeDtypeStruct((padded_rows, INPUT_DIM * G), jnp.float32),
        grid_spec=pltpu.PrefetchScalarGridSpec(
            num_scalar_prefetch=0,
            grid=(padded_rows // tb,),
            in_specs=[
                pl.BlockSpec((tb, INPUT_DIM * G), lambda i: (i, 0)),
                pl.BlockSpec((tb, LATENT_DIM * G), lambda i: (i, 0)),
                # Parameter slab: same block every step -> stays resident in VMEM.
                pl.BlockSpec((slab_rows, slab_w), lambda i: (0, 0)),
            ],
            out_specs=pl.BlockSpec((tb, INPUT_DIM * G), lambda i: (i, 0)),
        ),
        compiler_params=pltpu.CompilerParams(
            dimension_semantics=("parallel",)),
    )(xg, eg, param_slab)

    # Unfold the lane groups back to (batch, 2) and drop padding.
    return out.reshape(padded_rows * G, INPUT_DIM)[:batch]


def vae_forward_ref(x, eps, params):
    """Pure-JAX reference (unfused) for correctness checking."""
    h = jnp.maximum(x @ params["w_enc1"] + params["b_enc1"], 0.0)
    h = jnp.maximum(h @ params["w_enc2"] + params["b_enc2"], 0.0)
    mu = h @ params["w_mu"] + params["b_mu"]
    logvar = h @ params["w_logvar"] + params["b_logvar"]
    z = mu + eps * jnp.exp(0.5 * logvar)
    d = jnp.maximum(z @ params["w_dec1"] + params["b_dec1"], 0.0)
    d = jnp.maximum(d @ params["w_dec2"] + params["b_dec2"], 0.0)
    return d @ params["w_dec3"] + params["b_dec3"]


if __name__ == "__main__":
    key = jax.random.PRNGKey(0)
    k_params, k_x, k_eps = jax.random.split(key, 3)

    params = init_params(k_params)
    slab8 = pack_params(params, group=8)   # v6e / v7x packing

    # Small demo batch (single grid step).
    batch = 8
    x = jax.random.normal(k_x, (batch, INPUT_DIM), jnp.float32)
    # eps ~ N(0,1) (torch.randn_like in reparameterize); sampled outside the kernel so the
    # kernel stays deterministic given its inputs.
    eps = jax.random.normal(k_eps, (batch, LATENT_DIM), jnp.float32)

    out = vae_forward(x, eps, slab8, group=8)
    jax.block_until_ready(out)
    ref = vae_forward_ref(x, eps, params)
    assert out.shape == (batch, INPUT_DIM)
    assert jnp.allclose(out, ref, atol=1e-5, rtol=1e-5), "mismatch (batch=8, G=8)"

    # Larger ragged batch exercising the multi-step pipelined path and pad/slice logic.
    batch2 = 1000
    k_x2, k_e2 = jax.random.split(jax.random.PRNGKey(1))
    x2 = jax.random.normal(k_x2, (batch2, INPUT_DIM), jnp.float32)
    eps2 = jax.random.normal(k_e2, (batch2, LATENT_DIM), jnp.float32)
    out2 = vae_forward(x2, eps2, slab8, group=8, batch_tile=256)
    jax.block_until_ready(out2)
    ref2 = vae_forward_ref(x2, eps2, params)
    assert jnp.allclose(out2, ref2, atol=1e-5, rtol=1e-5), "mismatch (batch=1000, G=8)"

    # v5e-friendly packing: per-layer N capped at 128.
    slab4 = pack_params(params, group=4)
    out3 = vae_forward(x2, eps2, slab4, group=4, batch_tile=256)
    jax.block_until_ready(out3)
    assert jnp.allclose(out3, ref2, atol=1e-5, rtol=1e-5), "mismatch (batch=1000, G=4)"

    print("KERNEL_OK")
</pallas_src>

<mosaic_0001>
module attributes {stable_mosaic.version = 11 : i64} {
  func.func @kernel(%arg0: i32, %arg1: memref<8x16xf32, #tpu.memory_space<vmem>>, %arg2: memref<8x16xf32, #tpu.memory_space<vmem>>, %arg3: memref<808x256xf32, #tpu.memory_space<vmem>>, %arg4: memref<8x16xf32, #tpu.memory_space<vmem>>) attributes {dimension_semantics = [#tpu.dimension_semantics<parallel>], iteration_bounds = array<i64: 1>, scalar_prefetch = 0 : i64, scratch_operands = 0 : i64, tpu.core_type = #tpu.core_type<tc>, window_params = [{transform_indices = @transform_0, window_bounds = array<i64: 8, 16>}, {transform_indices = @transform_1, window_bounds = array<i64: 8, 16>}, {pipeline_mode = #tpu.pipeline_mode<synchronous>, transform_indices = @transform_2, window_bounds = array<i64: 808, 256>}, {transform_indices = @transform_3, window_bounds = array<i64: 8, 16>}]} {
    %c0 = arith.constant 0 : index
    %c0_0 = arith.constant 0 : index
    %0 = vector.load %arg1[%c0, %c0_0] : memref<8x16xf32, #tpu.memory_space<vmem>>, vector<8x16xf32>
    %c0_1 = arith.constant 0 : index
    %c0_2 = arith.constant 0 : index
    %1 = vector.load %arg2[%c0_1, %c0_2] : memref<8x16xf32, #tpu.memory_space<vmem>>, vector<8x16xf32>
    %c800 = arith.constant 800 : index
    %c0_3 = arith.constant 0 : index
    %2 = vector.load %arg3[%c800, %c0_3] : memref<808x256xf32, #tpu.memory_space<vmem>>, vector<8x256xf32>
    %c0_4 = arith.constant 0 : index
    %c0_5 = arith.constant 0 : index
    %3 = vector.load %arg3[%c0_4, %c0_5] : memref<808x256xf32, #tpu.memory_space<vmem>>, vector<16x256xf32>
    %cst = arith.constant dense<0.000000e+00> : vector<8x256xf32>
    %4 = tpu.matmul %0, %3, %cst {dimension_numbers = #tpu.dot_dimension_numbers<[1], [0], [0], [1], [0, 0, 1, 1], [], []>} : vector<8x16xf32>, vector<16x256xf32>, vector<8x256xf32> -> vector<8x256xf32>
    %5 = vector.extract_strided_slice %2 {offsets = [0, 0], sizes = [1, 256], strides = [1, 1]} : vector<8x256xf32> to vector<1x256xf32>
    %6 = vector.broadcast %5 : vector<1x256xf32> to vector<8x256xf32>
    %7 = arith.addf %4, %6 : vector<8x256xf32>
    %cst_6 = arith.constant 0.000000e+00 : f32
    %8 = vector.broadcast %cst_6 : f32 to vector<8x256xf32>
    %9 = arith.maximumf %7, %8 : vector<8x256xf32>
    %c16 = arith.constant 16 : index
    %c0_7 = arith.constant 0 : index
    %10 = vector.load %arg3[%c16, %c0_7] : memref<808x256xf32, #tpu.memory_space<vmem>>, vector<256x128xf32>
    %cst_8 = arith.constant dense<0.000000e+00> : vector<8x128xf32>
    %11 = tpu.matmul %9, %10, %cst_8 {dimension_numbers = #tpu.dot_dimension_numbers<[1], [0], [0], [1], [0, 0, 1, 1], [], []>} : vector<8x256xf32>, vector<256x128xf32>, vector<8x128xf32> -> vector<8x128xf32>
    %12 = vector.extract_strided_slice %2 {offsets = [1, 0], sizes = [1, 128], strides = [1, 1]} : vector<8x256xf32> to vector<1x128xf32>
    %13 = vector.broadcast %12 : vector<1x128xf32> to vector<8x128xf32>
    %14 = arith.addf %11, %13 : vector<8x128xf32>
    %cst_9 = arith.constant 0.000000e+00 : f32
    %15 = vector.broadcast %cst_9 : f32 to vector<8x128xf32>
    %16 = arith.maximumf %14, %15 : vector<8x128xf32>
    %c272 = arith.constant 272 : index
    %c0_10 = arith.constant 0 : index
    %17 = vector.load %arg3[%c272, %c0_10] : memref<808x256xf32, #tpu.memory_space<vmem>>, vector<128x32xf32>
    %cst_11 = arith.constant dense<0.000000e+00> : vector<8x32xf32>
    %18 = tpu.matmul %16, %17, %cst_11 {dimension_numbers = #tpu.dot_dimension_numbers<[1], [0], [0], [1], [0, 0, 1, 1], [], []>} : vector<8x128xf32>, vector<128x32xf32>, vector<8x32xf32> -> vector<8x32xf32>
    %19 = vector.extract_strided_slice %2 {offsets = [2, 0], sizes = [1, 32], strides = [1, 1]} : vector<8x256xf32> to vector<1x32xf32>
    %20 = vector.broadcast %19 : vector<1x32xf32> to vector<8x32xf32>
    %21 = arith.addf %18, %20 : vector<8x32xf32>
    %22 = vector.extract_strided_slice %21 {offsets = [0, 0], sizes = [8, 16], strides = [1, 1]} : vector<8x32xf32> to vector<8x16xf32>
    %23 = vector.extract_strided_slice %21 {offsets = [0, 16], sizes = [8, 16], strides = [1, 1]} : vector<8x32xf32> to vector<8x16xf32>
    %cst_12 = arith.constant 5.000000e-01 : f32
    %24 = vector.broadcast %cst_12 : f32 to vector<8x16xf32>
    %25 = arith.mulf %24, %23 : vector<8x16xf32>
    %26 = math.exp %25 : vector<8x16xf32>
    %27 = arith.mulf %1, %26 : vector<8x16xf32>
    %28 = arith.addf %22, %27 : vector<8x16xf32>
    %c400 = arith.constant 400 : index
    %c0_13 = arith.constant 0 : index
    %29 = vector.load %arg3[%c400, %c0_13] : memref<808x256xf32, #tpu.memory_space<vmem>>, vector<16x128xf32>
    %cst_14 = arith.constant dense<0.000000e+00> : vector<8x128xf32>
    %30 = tpu.matmul %28, %29, %cst_14 {dimension_numbers = #tpu.dot_dimension_numbers<[1], [0], [0], [1], [0, 0, 1, 1], [], []>} : vector<8x16xf32>, vector<16x128xf32>, vector<8x128xf32> -> vector<8x128xf32>
    %31 = vector.extract_strided_slice %2 {offsets = [3, 0], sizes = [1, 128], strides = [1, 1]} : vector<8x256xf32> to vector<1x128xf32>
    %32 = vector.broadcast %31 : vector<1x128xf32> to vector<8x128xf32>
    %33 = arith.addf %30, %32 : vector<8x128xf32>
    %cst_15 = arith.constant 0.000000e+00 : f32
    %34 = vector.broadcast %cst_15 : f32 to vector<8x128xf32>
    %35 = arith.maximumf %33, %34 : vector<8x128xf32>
    %c416 = arith.constant 416 : index
    %c0_16 = arith.constant 0 : index
    %36 = vector.load %arg3[%c416, %c0_16] : memref<808x256xf32, #tpu.memory_space<vmem>>, vector<128x256xf32>
    %cst_17 = arith.constant dense<0.000000e+00> : vector<8x256xf32>
    %37 = tpu.matmul %35, %36, %cst_17 {dimension_numbers = #tpu.dot_dimension_numbers<[1], [0], [0], [1], [0, 0, 1, 1], [], []>} : vector<8x128xf32>, vector<128x256xf32>, vector<8x256xf32> -> vector<8x256xf32>
    %38 = vector.extract_strided_slice %2 {offsets = [4, 0], sizes = [1, 256], strides = [1, 1]} : vector<8x256xf32> to vector<1x256xf32>
    %39 = vector.broadcast %38 : vector<1x256xf32> to vector<8x256xf32>
    %40 = arith.addf %37, %39 : vector<8x256xf32>
    %cst_18 = arith.constant 0.000000e+00 : f32
    %41 = vector.broadcast %cst_18 : f32 to vector<8x256xf32>
    %42 = arith.maximumf %40, %41 : vector<8x256xf32>
    %c544 = arith.constant 544 : index
    %c0_19 = arith.constant 0 : index
    %43 = vector.load %arg3[%c544, %c0_19] : memref<808x256xf32, #tpu.memory_space<vmem>>, vector<256x16xf32>
    %cst_20 = arith.constant dense<0.000000e+00> : vector<8x16xf32>
    %44 = tpu.matmul %42, %43, %cst_20 {dimension_numbers = #tpu.dot_dimension_numbers<[1], [0], [0], [1], [0, 0, 1, 1], [], []>} : vector<8x256xf32>, vector<256x16xf32>, vector<8x16xf32> -> vector<8x16xf32>
    %45 = vector.extract_strided_slice %2 {offsets = [5, 0], sizes = [1, 16], strides = [1, 1]} : vector<8x256xf32> to vector<1x16xf32>
    %46 = vector.broadcast %45 : vector<1x16xf32> to vector<8x16xf32>
    %47 = arith.addf %44, %46 : vector<8x16xf32>
    %c0_21 = arith.constant 0 : index
    %c0_22 = arith.constant 0 : index
    %48 = vector.load %arg4[%c0_21, %c0_22] : memref<8x16xf32, #tpu.memory_space<vmem>>, vector<8x16xf32>
    tpu.vector_store %arg4[%c0_21, %c0_22], %47 {strides = array<i32>} : memref<8x16xf32, #tpu.memory_space<vmem>>, vector<8x16xf32>,
    return
  }
  func.func @transform_0(%arg0: i32) -> (i32, i32) {
    %c0_i32 = arith.constant 0 : i32
    %c0_i32_0 = arith.constant 0 : i32
    return %arg0, %c0_i32 : i32, i32
  }
  func.func @transform_1(%arg0: i32) -> (i32, i32) {
    %c0_i32 = arith.constant 0 : i32
    %c0_i32_0 = arith.constant 0 : i32
    return %arg0, %c0_i32 : i32, i32
  }
  func.func @transform_2(%arg0: i32) -> (i32, i32) {
    %c0_i32 = arith.constant 0 : i32
    %c0_i32_0 = arith.constant 0 : i32
    %c0_i32_1 = arith.constant 0 : i32
    return %c0_i32, %c0_i32_0 : i32, i32
  }
  func.func @transform_3(%arg0: i32) -> (i32, i32) {
    %c0_i32 = arith.constant 0 : i32
    %c0_i32_0 = arith.constant 0 : i32
    return %arg0, %c0_i32 : i32, i32
  }
}

</mosaic_0001>

<llo_original>
// kernel: vae_forward.1
$region0: #{vae_forward.1}
  #allocation0 [shape = 'u32[]', space=smem, size = 0x4, offset = 0x4, fixed_abs, tag = 'smem constant byte address 0x4 - core index']
  #allocation1 [shape = 'u32[144,128]{1,0:T(1,128)}', space=vmem, size = 0x12000, scoped, tag = 'internal scratch']
  %s0 = inlined_call_operand.vmem [shape: f32[8,16], index: 0, kind: input, shape index: {}]
  %s1 = inlined_call_operand.vmem [shape: f32[8,16], index: 1, kind: input, shape index: {}]
  %s2 = inlined_call_operand.hbm [shape: f32[808,256], index: 2, kind: input, shape index: {}]
  %s3 = inlined_call_operand.vmem [shape: f32[8,16], index: 3, kind: output, shape index: {}]
  %s4 = sld [smem:[#allocation0]]
  $region26: #{vae_forward.1} parent=0
    _
  %s6 = ssub.s32 1, %s4
  %s7 = scalar_select 0, %s6, %s4
  $region1: #{vae_forward.1} parent=0
    #allocation2 [shape = 'u8[827392]{0}', space=vmem, size = 0xca000, scoped, tag = 'input window, operand 2, single buffered']
    #allocation3 [shape = 's32[1]{0}', space=sflag, size = 0x4, scoped, tag = 'scoped memory for vae_forward.1']
    %8 = vsyncpa [#allocation3], 0
    // Predicated region
    $region2: #{vae_forward.1} parent=1 // pred_check
      _
    $region3: #{vae_forward.1} parent=1 // pred_check_branch
      %10 = sbr.rel (0) target = $region5
    $region4: #{vae_forward.1} parent=1 // pred_region
      _
    $region5: #{vae_forward.1} parent=1 // pred_fallthru
      _
    // Predicated region
    $region6: #{vae_forward.1} parent=1 // pred_check
      _
    $region7: #{vae_forward.1} parent=1 // pred_check_branch
      %12 = sbr.rel (0) target = $region9
    $region8: #{vae_forward.1} parent=1 // pred_region
      _
    $region9: #{vae_forward.1} parent=1 // pred_fallthru
      _
    // Predicated region
    $region10: #{vae_forward.1} parent=1 // pred_check
      _
    $region11: #{vae_forward.1} parent=1 // pred_check_branch
      %14 = sbr.rel (0) target = $region13
    $region12: #{vae_forward.1} parent=1 // pred_region
      %s16 = ssub.s32 25856, 25856
      %17 = vsyncadd [#allocation3], %s16
      %s18 = sshll.u32 [#allocation2], 4
      %s19 = int_to_ptr.vmem [resolvable:$true] %s18
      %24 = dma.hbm_to_vmem [thread:$0]  %s2, 25856, %s19, [#allocation3], 256, 256, 16
    $region13: #{vae_forward.1} parent=1 // pred_fallthru
      _
    // Predicated region
    $region14: #{vae_forward.1} parent=1 // pred_check
      _
    $region15: #{vae_forward.1} parent=1 // pred_check_branch
      %26 = sbr.rel (0) target = $region17
    $region16: #{vae_forward.1} parent=1 // pred_region
      %27 = dma.done [#allocation3], 25856
    $region17: #{vae_forward.1} parent=1 // pred_fallthru
      _
    %v28 = vld [vmem:[%s0] sm:$0xff]
    %v29 = vld [vmem:[%s1] sm:$0xff]
    %v30 = vld [vmem:[#allocation2 + $0x640] sm:$0xff]
    %v31 = vld [vmem:[#allocation2 + $0x648] sm:$0xff]
    %v32 = vld [vmem:[#allocation2] sm:$0xff]
    %v33 = vld [vmem:[#allocation2 + $0x8] sm:$0xff]
    %v34 = vld [vmem:[#allocation2 + $0x10] sm:$0xff]
    %v35 = vld [vmem:[#allocation2 + $0x18] sm:$0xff]
    %v36 = vlaneseq
    %v37 = vshrl.u32 %v36, 7
    %v38 = vsub.s32 0, %v37
    %v39 = vrot.slane %v30, %v38
    %v40 = vlaneseq
    %v41 = vshrl.u32 %v40, 7
    %v42 = vsub.s32 0, %v41
    %v43 = vrot.slane %v31, %v42
    %vm44 = vcmask 130048
    %v46 = vsel %vm44, %v28, 0
    %48 = vmatprep.subr.mxu0 %v33
    %49 = vmatpush1.msra.mxu0 %v32
    %50 = vmatprep.subr.mxu0 %v35
    %51 = vmatpush1.msra.mxu0 %v34
    %52 = vmatprep.subr.mxu0 0.0
    %53 = vmatpush1.msra.mxu0 0.0
    %54 = vmatprep.subr.mxu0 0.0
    %55 = vmatpush1.msra.mxu0 0.0
    %56 = vmatprep.subr.mxu0 0.0
    %57 = vmatpush1.msra.mxu0 0.0
    %58 = vmatprep.subr.mxu0 0.0
    %59 = vmatpush1.msra.mxu0 0.0
    %60 = vmatprep.subr.mxu0 0.0
    %61 = vmatpush1.msra.mxu0 0.0
    %62 = vmatprep.subr.mxu0 0.0
    %63 = vmatpush1.msra.mxu0 0.0
    %64 = vmatprep.subr.mxu0 0.0
    %65 = vmatpush1.msra.mxu0 0.0
    %66 = vmatprep.subr.mxu0 0.0
    %67 = vmatpush1.msra.mxu0 0.0
    %68 = vmatprep.subr.mxu0 0.0
    %69 = vmatpush1.msra.mxu0 0.0
    %70 = vmatprep.subr.mxu0 0.0
    %71 = vmatpush1.msra.mxu0 0.0
    %72 = vmatprep.subr.mxu0 0.0
    %73 = vmatpush1.msra.mxu0 0.0
    %74 = vmatprep.subr.mxu0 0.0
    %75 = vmatpush1.msra.mxu0 0.0
    %76 = vmatprep.subr.mxu0 0.0
    %77 = vmatpush1.msra.mxu0 0.0
    %78 = vmatprep.subr.mxu0 0.0
    %79 = vmatpush1.msra.mxu0 0.0
    %80 = vmatprep.subr.mxu0 0.0
    %81 = vmatpush1.msra.mxu0 0.0
    %82 = vmatprep.subr.mxu0 0.0
    %83 = vmatpush1.msra.mxu0 0.0
    %84 = vmatprep.subr.mxu0 0.0
    %85 = vmatpush1.msra.mxu0 0.0
    %86 = vmatprep.subr.mxu0 0.0
    %87 = vmatpush1.msra.mxu0 0.0
    %88 = vmatprep.subr.mxu0 0.0
    %89 = vmatpush1.msra.mxu0 0.0
    %90 = vmatprep.subr.mxu0 0.0
    %91 = vmatpush1.msra.mxu0 0.0
    %92 = vmatprep.subr.mxu0 0.0
    %93 = vmatpush1.msra.mxu0 0.0
    %94 = vmatprep.subr.mxu0 0.0
    %95 = vmatpush1.msra.mxu0 0.0
    %96 = vmatprep.subr.mxu0 0.0
    %97 = vmatpush1.msra.mxu0 0.0
    %98 = vmatprep.subr.mxu0 0.0
    %99 = vmatpush1.msra.mxu0 0.0
    %100 = vmatprep.subr.mxu0 0.0
    %101 = vmatpush1.msra.mxu0 0.0
    %102 = vmatprep.subr.mxu0 0.0
    %103 = vmatpush1.msra.mxu0 0.0
    %104 = vmatprep.subr.mxu0 0.0
    %105 = vmatpush1.msra.mxu0 0.0
    %106 = vmatprep.subr.mxu0 0.0
    %107 = vmatpush1.msra.mxu0 0.0
    %108 = vmatprep.subr.mxu0 0.0
    %109 = vmatpush1.msra.mxu0 0.0
    %110 = vmatprep.subr.mxu0 0.0
    %111 = vmatpush1.msra.mxu0 0.0
    %112 = vmatprep.mubr.f32.mxu0 0.0
    %113 = vmatmul.mubr.f32.gmra.mrb[0].mxu0 %v46
    %v114 = vpop.f32.mrb[0].mxu0
    %v115 = vadd.f32 %v39, %v114
    %v116 = vpop.f32.mrb[0].mxu0
    %v117 = vadd.f32 %v43, %v116
    %118 = vdwg.mxu0
    %v119 = vmax.f32 %v115, 0.0
    %v120 = vmax.f32 %v117, 0.0
    %v121 = vld [vmem:[#allocation2 + $0x20] sm:$0xff]
    %v122 = vld [vmem:[#allocation2 + $0x30] sm:$0xff]
    %v123 = vld [vmem:[#allocation2 + $0x40] sm:$0xff]
    %v124 = vld [vmem:[#allocation2 + $0x50] sm:$0xff]
    %v125 = vld [vmem:[#allocation2 + $0x60] sm:$0xff]
    %v126 = vld [vmem:[#allocation2 + $0x70] sm:$0xff]
    %v127 = vld [vmem:[#allocation2 + $0x80] sm:$0xff]
    %v128 = vld [vmem:[#allocation2 + $0x90] sm:$0xff]
    %v129 = vld [vmem:[#allocation2 + $0xa0] sm:$0xff]
    %v130 = vld [vmem:[#allocation2 + $0xb0] sm:$0xff]
    %v131 = vld [vmem:[#allocation2 + $0xc0] sm:$0xff]
    %v132 = vld [vmem:[#allocation2 + $0xd0] sm:$0xff]
    %v133 = vld [vmem:[#allocation2 + $0xe0] sm:$0xff]
    %v134 = vld [vmem:[#allocation2 + $0xf0] sm:$0xff]
    %v135 = vld [vmem:[#allocation2 + $0x100] sm:$0xff]
    %v136 = vld [vmem:[#allocation2 + $0x110] sm:$0xff]
    %v137 = vld [vmem:[#allocation2 + $0x120] sm:$0xff]
    %v138 = vld [vmem:[#allocation2 + $0x130] sm:$0xff]
    %v139 = vld [vmem:[#allocation2 + $0x140] sm:$0xff]
    %v140 = vld [vmem:[#allocation2 + $0x150] sm:$0xff]
    %v141 = vld [vmem:[#allocation2 + $0x160] sm:$0xff]
    %v142 = vld [vmem:[#allocation2 + $0x170] sm:$0xff]
    %v143 = vld [vmem:[#allocation2 + $0x180] sm:$0xff]
    %v144 = vld [vmem:[#allocation2 + $0x190] sm:$0xff]
    %v145 = vld [vmem:[#allocation2 + $0x1a0] sm:$0xff]
    %v146 = vld [vmem:[#allocation2 + $0x1b0] sm:$0xff]
    %v147 = vld [vmem:[#allocation2 + $0x1c0] sm:$0xff]
    %v148 = vld [vmem:[#allocation2 + $0x1d0] sm:$0xff]
    %v149 = vld [vmem:[#allocation2 + $0x1e0] sm:$0xff]
    %v150 = vld [vmem:[#allocation2 + $0x1f0] sm:$0xff]
    %v151 = vld [vmem:[#allocation2 + $0x200] sm:$0xff]
    %v152 = vld [vmem:[#allocation2 + $0x210] sm:$0xff]
    %v153 = vlaneseq
    %v154 = vshrl.u32 %v153, 7
    %v155 = vsub.s32 1, %v154
    %v156 = vrot.slane %v30, %v155
    %157 = vmatprep.subr.mxu0 0.0
    %158 = vmatpush1.msra.mxu0 %v121
    %159 = vmatprep.subr.mxu0 0.0
    %160 = vmatpush1.msra.mxu0 %v122
    %161 = vmatprep.subr.mxu0 0.0
    %162 = vmatpush1.msra.mxu0 %v123
    %163 = vmatprep.subr.mxu0 0.0
    %164 = vmatpush1.msra.mxu0 %v124
    %165 = vmatprep.subr.mxu0 0.0
    %166 = vmatpush1.msra.mxu0 %v125
    %167 = vmatprep.subr.mxu0 0.0
    %168 = vmatpush1.msra.mxu0 %v126
    %169 = vmatprep.subr.mxu0 0.0
    %170 = vmatpush1.msra.mxu0 %v127
    %171 = vmatprep.subr.mxu0 0.0
    %172 = vmatpush1.msra.mxu0 %v128
    %173 = vmatprep.subr.mxu0 0.0
    %174 = vmatpush1.msra.mxu0 %v129
    %175 = vmatprep.subr.mxu0 0.0
    %176 = vmatpush1.msra.mxu0 %v130
    %177 = vmatprep.subr.mxu0 0.0
    %178 = vmatpush1.msra.mxu0 %v131
    %179 = vmatprep.subr.mxu0 0.0
    %180 = vmatpush1.msra.mxu0 %v132
    %181 = vmatprep.subr.mxu0 0.0
    %182 = vmatpush1.msra.mxu0 %v133
    %183 = vmatprep.subr.mxu0 0.0
    %184 = vmatpush1.msra.mxu0 %v134
    %185 = vmatprep.subr.mxu0 0.0
    %186 = vmatpush1.msra.mxu0 %v135
    %187 = vmatprep.subr.mxu0 0.0
    %188 = vmatpush1.msra.mxu0 %v136
    %189 = vmatprep.subr.mxu0 0.0
    %190 = vmatpush1.msra.mxu0 %v137
    %191 = vmatprep.subr.mxu0 0.0
    %192 = vmatpush1.msra.mxu0 %v138
    %193 = vmatprep.subr.mxu0 0.0
    %194 = vmatpush1.msra.mxu0 %v139
    %195 = vmatprep.subr.mxu0 0.0
    %196 = vmatpush1.msra.mxu0 %v140
    %197 = vmatprep.subr.mxu0 0.0
    %198 = vmatpush1.msra.mxu0 %v141
    %199 = vmatprep.subr.mxu0 0.0
    %200 = vmatpush1.msra.mxu0 %v142
    %201 = vmatprep.subr.mxu0 0.0
    %202 = vmatpush1.msra.mxu0 %v143
    %203 = vmatprep.subr.mxu0 0.0
    %204 = vmatpush1.msra.mxu0 %v144
    %205 = vmatprep.subr.mxu0 0.0
    %206 = vmatpush1.msra.mxu0 %v145
    %207 = vmatprep.subr.mxu0 0.0
    %208 = vmatpush1.msra.mxu0 %v146
    %209 = vmatprep.subr.mxu0 0.0
    %210 = vmatpush1.msra.mxu0 %v147
    %211 = vmatprep.subr.mxu0 0.0
    %212 = vmatpush1.msra.mxu0 %v148
    %213 = vmatprep.subr.mxu0 0.0
    %214 = vmatpush1.msra.mxu0 %v149
    %215 = vmatprep.subr.mxu0 0.0
    %216 = vmatpush1.msra.mxu0 %v150
    %217 = vmatprep.subr.mxu0 0.0
    %218 = vmatpush1.msra.mxu0 %v151
    %219 = vmatprep.subr.mxu0 0.0
    %220 = vmatpush1.msra.mxu0 %v152
    %221 = vmatprep.mubr.f32.mxu0 %v120
    %222 = vmatmul.mubr.f32.gmra.mrb[0].mxu0 %v119
    %v223 = vpop.f32.mrb[0].mxu0
    %v224 = vadd.f32 %v156, %v223
    %v225 = vpop.f32.mrb[0].mxu0
    %226 = vdwg.mxu0
    %v227 = vmax.f32 %v224, 0.0
    %v228 = vld [vmem:[#allocation2 + $0x220] sm:$0xff]
    %v229 = vld [vmem:[#allocation2 + $0x230] sm:$0xff]
    %v230 = vld [vmem:[#allocation2 + $0x240] sm:$0xff]
    %v231 = vld [vmem:[#allocation2 + $0x250] sm:$0xff]
    %v232 = vld [vmem:[#allocation2 + $0x260] sm:$0xff]
    %v233 = vld [vmem:[#allocation2 + $0x270] sm:$0xff]
    %v234 = vld [vmem:[#allocation2 + $0x280] sm:$0xff]
    %v235 = vld [vmem:[#allocation2 + $0x290] sm:$0xff]
    %v236 = vld [vmem:[#allocation2 + $0x2a0] sm:$0xff]
    %v237 = vld [vmem:[#allocation2 + $0x2b0] sm:$0xff]
    %v238 = vld [vmem:[#allocation2 + $0x2c0] sm:$0xff]
    %v239 = vld [vmem:[#allocation2 + $0x2d0] sm:$0xff]
    %v240 = vld [vmem:[#allocation2 + $0x2e0] sm:$0xff]
    %v241 = vld [vmem:[#allocation2 + $0x2f0] sm:$0xff]
    %v242 = vld [vmem:[#allocation2 + $0x300] sm:$0xff]
    %v243 = vld [vmem:[#allocation2 + $0x310] sm:$0xff]
    %v244 = vlaneseq
    %v245 = vshrl.u32 %v244, 7
    %v246 = vsub.s32 2, %v245
    %v247 = vrot.slane %v30, %v246
    %248 = vmatprep.subr.mxu0 0.0
    %249 = vmatpush1.msra.mxu0 %v228
    %250 = vmatprep.subr.mxu0 0.0
    %251 = vmatpush1.msra.mxu0 %v229
    %252 = vmatprep.subr.mxu0 0.0
    %253 = vmatpush1.msra.mxu0 %v230
    %254 = vmatprep.subr.mxu0 0.0
    %255 = vmatpush1.msra.mxu0 %v231
    %256 = vmatprep.subr.mxu0 0.0
    %257 = vmatpush1.msra.mxu0 %v232
    %258 = vmatprep.subr.mxu0 0.0
    %259 = vmatpush1.msra.mxu0 %v233
    %260 = vmatprep.subr.mxu0 0.0
    %261 = vmatpush1.msra.mxu0 %v234
    %262 = vmatprep.subr.mxu0 0.0
    %263 = vmatpush1.msra.mxu0 %v235
    %264 = vmatprep.subr.mxu0 0.0
    %265 = vmatpush1.msra.mxu0 %v236
    %266 = vmatprep.subr.mxu0 0.0
    %267 = vmatpush1.msra.mxu0 %v237
    %268 = vmatprep.subr.mxu0 0.0
    %269 = vmatpush1.msra.mxu0 %v238
    %270 = vmatprep.subr.mxu0 0.0
    %271 = vmatpush1.msra.mxu0 %v239
    %272 = vmatprep.subr.mxu0 0.0
    %273 = vmatpush1.msra.mxu0 %v240
    %274 = vmatprep.subr.mxu0 0.0
    %275 = vmatpush1.msra.mxu0 %v241
    %276 = vmatprep.subr.mxu0 0.0
    %277 = vmatpush1.msra.mxu0 %v242
    %278 = vmatprep.subr.mxu0 0.0
    %279 = vmatpush1.msra.mxu0 %v243
    %280 = vmatprep.subr.mxu0 0.0
    %281 = vmatpush1.msra.mxu0 0.0
    %282 = vmatprep.subr.mxu0 0.0
    %283 = vmatpush1.msra.mxu0 0.0
    %284 = vmatprep.subr.mxu0 0.0
    %285 = vmatpush1.msra.mxu0 0.0
    %286 = vmatprep.subr.mxu0 0.0
    %287 = vmatpush1.msra.mxu0 0.0
    %288 = vmatprep.subr.mxu0 0.0
    %289 = vmatpush1.msra.mxu0 0.0
    %290 = vmatprep.subr.mxu0 0.0
    %291 = vmatpush1.msra.mxu0 0.0
    %292 = vmatprep.subr.mxu0 0.0
    %293 = vmatpush1.msra.mxu0 0.0
    %294 = vmatprep.subr.mxu0 0.0
    %295 = vmatpush1.msra.mxu0 0.0
    %296 = vmatprep.subr.mxu0 0.0
    %297 = vmatpush1.msra.mxu0 0.0
    %298 = vmatprep.subr.mxu0 0.0
    %299 = vmatpush1.msra.mxu0 0.0
    %300 = vmatprep.subr.mxu0 0.0
    %301 = vmatpush1.msra.mxu0 0.0
    %302 = vmatprep.subr.mxu0 0.0
    %303 = vmatpush1.msra.mxu0 0.0
    %304 = vmatprep.subr.mxu0 0.0
    %305 = vmatpush1.msra.mxu0 0.0
    %306 = vmatprep.subr.mxu0 0.0
    %307 = vmatpush1.msra.mxu0 0.0
    %308 = vmatprep.subr.mxu0 0.0
    %309 = vmatpush1.msra.mxu0 0.0
    %310 = vmatprep.subr.mxu0 0.0
    %311 = vmatpush1.msra.mxu0 0.0
    %312 = vmatprep.mubr.f32.mxu0 0.0
    %313 = vmatmul.mubr.f32.gmra.mrb[0].mxu0 %v227
    %v314 = vpop.f32.mrb[0].mxu0
    %v315 = vadd.f32 %v247, %v314
    %v316 = vpop.f32.mrb[0].mxu0
    %317 = vdwg.mxu0
    %v318 = vmul.f32 %v315, 0.5
    %v319 = vmul.f32 %v318, 1.442695
    %v320 = vpow.pop %v319
    %322 = vrot.lane.b32.xlu0 %v320, 112
    %v323 = vpop.permute.xlu0 %322
    %v325 = vmul.f32 %v29, %v323
    %v326 = vadd.f32 %v315, %v325
    %v327 = vld [vmem:[#allocation2 + $0x320] sm:$0xff]
    %v328 = vld [vmem:[#allocation2 + $0x330] sm:$0xff]
    %v329 = vlaneseq
    %v330 = vshrl.u32 %v329, 7
    %v331 = vsub.s32 3, %v330
    %v332 = vrot.slane %v30, %v331
    %v334 = vsel %vm44, %v326, 0
    %336 = vmatprep.subr.mxu0 0.0
    %337 = vmatpush1.msra.mxu0 %v327
    %338 = vmatprep.subr.mxu0 0.0
    %339 = vmatpush1.msra.mxu0 %v328
    %340 = vmatprep.subr.mxu0 0.0
    %341 = vmatpush1.msra.mxu0 0.0
    %342 = vmatprep.subr.mxu0 0.0
    %343 = vmatpush1.msra.mxu0 0.0
    %344 = vmatprep.subr.mxu0 0.0
    %345 = vmatpush1.msra.mxu0 0.0
    %346 = vmatprep.subr.mxu0 0.0
    %347 = vmatpush1.msra.mxu0 0.0
    %348 = vmatprep.subr.mxu0 0.0
    %349 = vmatpush1.msra.mxu0 0.0
    %350 = vmatprep.subr.mxu0 0.0
    %351 = vmatpush1.msra.mxu0 0.0
    %352 = vmatprep.subr.mxu0 0.0
    %353 = vmatpush1.msra.mxu0 0.0
    %354 = vmatprep.subr.mxu0 0.0
    %355 = vmatpush1.msra.mxu0 0.0
    %356 = vmatprep.subr.mxu0 0.0
    %357 = vmatpush1.msra.mxu0 0.0
    %358 = vmatprep.subr.mxu0 0.0
    %359 = vmatpush1.msra.mxu0 0.0
    %360 = vmatprep.subr.mxu0 0.0
    %361 = vmatpush1.msra.mxu0 0.0
    %362 = vmatprep.subr.mxu0 0.0
    %363 = vmatpush1.msra.mxu0 0.0
    %364 = vmatprep.subr.mxu0 0.0
    %365 = vmatpush1.msra.mxu0 0.0
    %366 = vmatprep.subr.mxu0 0.0
    %367 = vmatpush1.msra.mxu0 0.0
    %368 = vmatprep.subr.mxu0 0.0
    %369 = vmatpush1.msra.mxu0 0.0
    %370 = vmatprep.subr.mxu0 0.0
    %371 = vmatpush1.msra.mxu0 0.0
    %372 = vmatprep.subr.mxu0 0.0
    %373 = vmatpush1.msra.mxu0 0.0
    %374 = vmatprep.subr.mxu0 0.0
    %375 = vmatpush1.msra.mxu0 0.0
    %376 = vmatprep.subr.mxu0 0.0
    %377 = vmatpush1.msra.mxu0 0.0
    %378 = vmatprep.subr.mxu0 0.0
    %379 = vmatpush1.msra.mxu0 0.0
    %380 = vmatprep.subr.mxu0 0.0
    %381 = vmatpush1.msra.mxu0 0.0
    %382 = vmatprep.subr.mxu0 0.0
    %383 = vmatpush1.msra.mxu0 0.0
    %384 = vmatprep.subr.mxu0 0.0
    %385 = vmatpush1.msra.mxu0 0.0
    %386 = vmatprep.subr.mxu0 0.0
    %387 = vmatpush1.msra.mxu0 0.0
    %388 = vmatprep.subr.mxu0 0.0
    %389 = vmatpush1.msra.mxu0 0.0
    %390 = vmatprep.subr.mxu0 0.0
    %391 = vmatpush1.msra.mxu0 0.0
    %392 = vmatprep.subr.mxu0 0.0
    %393 = vmatpush1.msra.mxu0 0.0
    %394 = vmatprep.subr.mxu0 0.0
    %395 = vmatpush1.msra.mxu0 0.0
    %396 = vmatprep.subr.mxu0 0.0
    %397 = vmatpush1.msra.mxu0 0.0
    %398 = vmatprep.subr.mxu0 0.0
    %399 = vmatpush1.msra.mxu0 0.0
    %400 = vmatprep.mubr.f32.mxu0 0.0
    %401 = vmatmul.mubr.f32.gmra.mrb[0].mxu0 %v334
    %v402 = vpop.f32.mrb[0].mxu0
    %v403 = vadd.f32 %v332, %v402
    %v404 = vpop.f32.mrb[0].mxu0
    %405 = vdwg.mxu0
    %v406 = vmax.f32 %v403, 0.0
    %v407 = vld [vmem:[#allocation2 + $0x340] sm:$0xff]
    %v408 = vld [vmem:[#allocation2 + $0x348] sm:$0xff]
    %v409 = vld [vmem:[#allocation2 + $0x350] sm:$0xff]
    %v410 = vld [vmem:[#allocation2 + $0x358] sm:$0xff]
    %v411 = vld [vmem:[#allocation2 + $0x360] sm:$0xff]
    %v412 = vld [vmem:[#allocation2 + $0x368] sm:$0xff]
    %v413 = vld [vmem:[#allocation2 + $0x370] sm:$0xff]
    %v414 = vld [vmem:[#allocation2 + $0x378] sm:$0xff]
    %v415 = vld [vmem:[#allocation2 + $0x380] sm:$0xff]
    %v416 = vld [vmem:[#allocation2 + $0x388] sm:$0xff]
    %v417 = vld [vmem:[#allocation2 + $0x390] sm:$0xff]
    %v418 = vld [vmem:[#allocation2 + $0x398] sm:$0xff]
    %v419 = vld [vmem:[#allocation2 + $0x3a0] sm:$0xff]
    %v420 = vld [vmem:[#allocation2 + $0x3a8] sm:$0xff]
    %v421 = vld [vmem:[#allocation2 + $0x3b0] sm:$0xff]
    %v422 = vld [vmem:[#allocation2 + $0x3b8] sm:$0xff]
    %v423 = vld [vmem:[#allocation2 + $0x3c0] sm:$0xff]
    %v424 = vld [vmem:[#allocation2 + $0x3c8] sm:$0xff]
    %v425 = vld [vmem:[#allocation2 + $0x3d0] sm:$0xff]
    %v426 = vld [vmem:[#allocation2 + $0x3d8] sm:$0xff]
    %v427 = vld [vmem:[#allocation2 + $0x3e0] sm:$0xff]
    %v428 = vld [vmem:[#allocation2 + $0x3e8] sm:$0xff]
    %v429 = vld [vmem:[#allocation2 + $0x3f0] sm:$0xff]
    %v430 = vld [vmem:[#allocation2 + $0x3f8] sm:$0xff]
    %v431 = vld [vmem:[#allocation2 + $0x400] sm:$0xff]
    %v432 = vld [vmem:[#allocation2 + $0x408] sm:$0xff]
    %v433 = vld [vmem:[#allocation2 + $0x410] sm:$0xff]
    %v434 = vld [vmem:[#allocation2 + $0x418] sm:$0xff]
    %v435 = vld [vmem:[#allocation2 + $0x420] sm:$0xff]
    %v436 = vld [vmem:[#allocation2 + $0x428] sm:$0xff]
    %v437 = vld [vmem:[#allocation2 + $0x430] sm:$0xff]
    %v438 = vld [vmem:[#allocation2 + $0x438] sm:$0xff]
    %v439 = vlaneseq
    %v440 = vshrl.u32 %v439, 7
    %v441 = vsub.s32 4, %v440
    %v442 = vrot.slane %v30, %v441
    %v443 = vlaneseq
    %v444 = vshrl.u32 %v443, 7
    %v445 = vsub.s32 4, %v444
    %v446 = vrot.slane %v31, %v445
    %447 = vmatprep.subr.mxu0 %v408
    %448 = vmatpush1.msra.mxu0 %v407
    %449 = vmatprep.subr.mxu0 %v410
    %450 = vmatpush1.msra.mxu0 %v409
    %451 = vmatprep.subr.mxu0 %v412
    %452 = vmatpush1.msra.mxu0 %v411
    %453 = vmatprep.subr.mxu0 %v414
    %454 = vmatpush1.msra.mxu0 %v413
    %455 = vmatprep.subr.mxu0 %v416
    %456 = vmatpush1.msra.mxu0 %v415
    %457 = vmatprep.subr.mxu0 %v418
    %458 = vmatpush1.msra.mxu0 %v417
    %459 = vmatprep.subr.mxu0 %v420
    %460 = vmatpush1.msra.mxu0 %v419
    %461 = vmatprep.subr.mxu0 %v422
    %462 = vmatpush1.msra.mxu0 %v421
    %463 = vmatprep.subr.mxu0 %v424
    %464 = vmatpush1.msra.mxu0 %v423
    %465 = vmatprep.subr.mxu0 %v426
    %466 = vmatpush1.msra.mxu0 %v425
    %467 = vmatprep.subr.mxu0 %v428
    %468 = vmatpush1.msra.mxu0 %v427
    %469 = vmatprep.subr.mxu0 %v430
    %470 = vmatpush1.msra.mxu0 %v429
    %471 = vmatprep.subr.mxu0 %v432
    %472 = vmatpush1.msra.mxu0 %v431
    %473 = vmatprep.subr.mxu0 %v434
    %474 = vmatpush1.msra.mxu0 %v433
    %475 = vmatprep.subr.mxu0 %v436
    %476 = vmatpush1.msra.mxu0 %v435
    %477 = vmatprep.subr.mxu0 %v438
    %478 = vmatpush1.msra.mxu0 %v437
    %479 = vmatprep.subr.mxu0 0.0
    %480 = vmatpush1.msra.mxu0 0.0
    %481 = vmatprep.subr.mxu0 0.0
    %482 = vmatpush1.msra.mxu0 0.0
    %483 = vmatprep.subr.mxu0 0.0
    %484 = vmatpush1.msra.mxu0 0.0
    %485 = vmatprep.subr.mxu0 0.0
    %486 = vmatpush1.msra.mxu0 0.0
    %487 = vmatprep.subr.mxu0 0.0
    %488 = vmatpush1.msra.mxu0 0.0
    %489 = vmatprep.subr.mxu0 0.0
    %490 = vmatpush1.msra.mxu0 0.0
    %491 = vmatprep.subr.mxu0 0.0
    %492 = vmatpush1.msra.mxu0 0.0
    %493 = vmatprep.subr.mxu0 0.0
    %494 = vmatpush1.msra.mxu0 0.0
    %495 = vmatprep.subr.mxu0 0.0
    %496 = vmatpush1.msra.mxu0 0.0
    %497 = vmatprep.subr.mxu0 0.0
    %498 = vmatpush1.msra.mxu0 0.0
    %499 = vmatprep.subr.mxu0 0.0
    %500 = vmatpush1.msra.mxu0 0.0
    %501 = vmatprep.subr.mxu0 0.0
    %502 = vmatpush1.msra.mxu0 0.0
    %503 = vmatprep.subr.mxu0 0.0
    %504 = vmatpush1.msra.mxu0 0.0
    %505 = vmatprep.subr.mxu0 0.0
    %506 = vmatpush1.msra.mxu0 0.0
    %507 = vmatprep.subr.mxu0 0.0
    %508 = vmatpush1.msra.mxu0 0.0
    %509 = vmatprep.subr.mxu0 0.0
    %510 = vmatpush1.msra.mxu0 0.0
    %511 = vmatprep.mubr.f32.mxu0 0.0
    %512 = vmatmul.mubr.f32.gmra.mrb[0].mxu0 %v406
    %v513 = vpop.f32.mrb[0].mxu0
    %v514 = vadd.f32 %v442, %v513
    %v515 = vpop.f32.mrb[0].mxu0
    %v516 = vadd.f32 %v446, %v515
    %517 = vdwg.mxu0
    %v518 = vmax.f32 %v514, 0.0
    %v519 = vmax.f32 %v516, 0.0
    %v520 = vld [vmem:[#allocation2 + $0x440] sm:$0xff]
    %v521 = vld [vmem:[#allocation2 + $0x450] sm:$0xff]
    %v522 = vld [vmem:[#allocation2 + $0x460] sm:$0xff]
    %v523 = vld [vmem:[#allocation2 + $0x470] sm:$0xff]
    %v524 = vld [vmem:[#allocation2 + $0x480] sm:$0xff]
    %v525 = vld [vmem:[#allocation2 + $0x490] sm:$0xff]
    %v526 = vld [vmem:[#allocation2 + $0x4a0] sm:$0xff]
    %v527 = vld [vmem:[#allocation2 + $0x4b0] sm:$0xff]
    %v528 = vld [vmem:[#allocation2 + $0x4c0] sm:$0xff]
    %v529 = vld [vmem:[#allocation2 + $0x4d0] sm:$0xff]
    %v530 = vld [vmem:[#allocation2 + $0x4e0] sm:$0xff]
    %v531 = vld [vmem:[#allocation2 + $0x4f0] sm:$0xff]
    %v532 = vld [vmem:[#allocation2 + $0x500] sm:$0xff]
    %v533 = vld [vmem:[#allocation2 + $0x510] sm:$0xff]
    %v534 = vld [vmem:[#allocation2 + $0x520] sm:$0xff]
    %v535 = vld [vmem:[#allocation2 + $0x530] sm:$0xff]
    %v536 = vld [vmem:[#allocation2 + $0x540] sm:$0xff]
    %v537 = vld [vmem:[#allocation2 + $0x550] sm:$0xff]
    %v538 = vld [vmem:[#allocation2 + $0x560] sm:$0xff]
    %v539 = vld [vmem:[#allocation2 + $0x570] sm:$0xff]
    %v540 = vld [vmem:[#allocation2 + $0x580] sm:$0xff]
    %v541 = vld [vmem:[#allocation2 + $0x590] sm:$0xff]
    %v542 = vld [vmem:[#allocation2 + $0x5a0] sm:$0xff]
    %v543 = vld [vmem:[#allocation2 + $0x5b0] sm:$0xff]
    %v544 = vld [vmem:[#allocation2 + $0x5c0] sm:$0xff]
    %v545 = vld [vmem:[#allocation2 + $0x5d0] sm:$0xff]
    %v546 = vld [vmem:[#allocation2 + $0x5e0] sm:$0xff]
    %v547 = vld [vmem:[#allocation2 + $0x5f0] sm:$0xff]
    %v548 = vld [vmem:[#allocation2 + $0x600] sm:$0xff]
    %v549 = vld [vmem:[#allocation2 + $0x610] sm:$0xff]
    %v550 = vld [vmem:[#allocation2 + $0x620] sm:$0xff]
    %v551 = vld [vmem:[#allocation2 + $0x630] sm:$0xff]
    %v552 = vlaneseq
    %v553 = vshrl.u32 %v552, 7
    %v554 = vsub.s32 5, %v553
    %v555 = vrot.slane %v30, %v554
    %556 = vmatprep.subr.mxu0 0.0
    %557 = vmatpush1.msra.mxu0 %v520
    %558 = vmatprep.subr.mxu0 0.0
    %559 = vmatpush1.msra.mxu0 %v521
    %560 = vmatprep.subr.mxu0 0.0
    %561 = vmatpush1.msra.mxu0 %v522
    %562 = vmatprep.subr.mxu0 0.0
    %563 = vmatpush1.msra.mxu0 %v523
    %564 = vmatprep.subr.mxu0 0.0
    %565 = vmatpush1.msra.mxu0 %v524
    %566 = vmatprep.subr.mxu0 0.0
    %567 = vmatpush1.msra.mxu0 %v525
    %568 = vmatprep.subr.mxu0 0.0
    %569 = vmatpush1.msra.mxu0 %v526
    %570 = vmatprep.subr.mxu0 0.0
    %571 = vmatpush1.msra.mxu0 %v527
    %572 = vmatprep.subr.mxu0 0.0
    %573 = vmatpush1.msra.mxu0 %v528
    %574 = vmatprep.subr.mxu0 0.0
    %575 = vmatpush1.msra.mxu0 %v529
    %576 = vmatprep.subr.mxu0 0.0
    %577 = vmatpush1.msra.mxu0 %v530
    %578 = vmatprep.subr.mxu0 0.0
    %579 = vmatpush1.msra.mxu0 %v531
    %580 = vmatprep.subr.mxu0 0.0
    %581 = vmatpush1.msra.mxu0 %v532
    %582 = vmatprep.subr.mxu0 0.0
    %583 = vmatpush1.msra.mxu0 %v533
    %584 = vmatprep.subr.mxu0 0.0
    %585 = vmatpush1.msra.mxu0 %v534
    %586 = vmatprep.subr.mxu0 0.0
    %587 = vmatpush1.msra.mxu0 %v535
    %588 = vmatprep.subr.mxu0 0.0
    %589 = vmatpush1.msra.mxu0 %v536
    %590 = vmatprep.subr.mxu0 0.0
    %591 = vmatpush1.msra.mxu0 %v537
    %592 = vmatprep.subr.mxu0 0.0
    %593 = vmatpush1.msra.mxu0 %v538
    %594 = vmatprep.subr.mxu0 0.0
    %595 = vmatpush1.msra.mxu0 %v539
    %596 = vmatprep.subr.mxu0 0.0
    %597 = vmatpush1.msra.mxu0 %v540
    %598 = vmatprep.subr.mxu0 0.0
    %599 = vmatpush1.msra.mxu0 %v541
    %600 = vmatprep.subr.mxu0 0.0
    %601 = vmatpush1.msra.mxu0 %v542
    %602 = vmatprep.subr.mxu0 0.0
    %603 = vmatpush1.msra.mxu0 %v543
    %604 = vmatprep.subr.mxu0 0.0
    %605 = vmatpush1.msra.mxu0 %v544
    %606 = vmatprep.subr.mxu0 0.0
    %607 = vmatpush1.msra.mxu0 %v545
    %608 = vmatprep.subr.mxu0 0.0
    %609 = vmatpush1.msra.mxu0 %v546
    %610 = vmatprep.subr.mxu0 0.0
    %611 = vmatpush1.msra.mxu0 %v547
    %612 = vmatprep.subr.mxu0 0.0
    %613 = vmatpush1.msra.mxu0 %v548
    %614 = vmatprep.subr.mxu0 0.0
    %615 = vmatpush1.msra.mxu0 %v549
    %616 = vmatprep.subr.mxu0 0.0
    %617 = vmatpush1.msra.mxu0 %v550
    %618 = vmatprep.subr.mxu0 0.0
    %619 = vmatpush1.msra.mxu0 %v551
    %620 = vmatprep.mubr.f32.mxu0 %v519
    %621 = vmatmul.mubr.f32.gmra.mrb[0].mxu0 %v518
    %v622 = vpop.f32.mrb[0].mxu0
    %v623 = vadd.f32 %v555, %v622
    %v624 = vpop.f32.mrb[0].mxu0
    %625 = vdwg.mxu0
    %626 = vst.msk [vmem:[%s3] sm:$0xff] %vm44, %v623
    // Predicated region
    $region18: #{vae_forward.1} parent=1 // pred_check
      _
    $region19: #{vae_forward.1} parent=1 // pred_check_branch
      %628 = sbr.rel (0) target = $region21
    $region20: #{vae_forward.1} parent=1 // pred_region
      _
    $region21: #{vae_forward.1} parent=1 // pred_fallthru
      _
    // Predicated region
    $region22: #{vae_forward.1} parent=1 // pred_check
      _
    $region23: #{vae_forward.1} parent=1 // pred_check_branch
      %630 = sbr.rel (0) target = $region25
    $region24: #{vae_forward.1} parent=1 // pred_region
      _
    $region25: #{vae_forward.1} parent=1 // pred_fallthru
      _
    %631 = vsyncpa [#allocation3], 1

</llo_original>
